<compile_context>
chip_gen: v7x
topology: tpu7x:2x2x1
jax: 0.10.0
libtpu: 0.0.40
codegen_flags: <defaults>
</compile_context>

<pallas_src>
import jax
import jax.numpy as jnp
from jax import lax
from jax.experimental import pallas as pl
from jax.experimental.pallas import tpu as pltpu


# --------------------------------------------------------------------------
# Kernels (Bt sub-batches per block, fully unrolled: Bt <= 8 by construction)
# --------------------------------------------------------------------------
def _make_fused_kernel(bt):
    """o[b] = W @ x[b] with W = W2 @ W1 (C x C). Used when 2K > C."""
    def kernel(x_ref, w_ref, o_ref):
        # x_ref/o_ref: (Bt, C, TN); w_ref: (C, C)
        w = w_ref[...]
        for b in range(bt):                       # static -> unrolled
            y = lax.dot_general(
                w, x_ref[b],
                dimension_numbers=(((1,), (0,)), ((), ())),
                preferred_element_type=jnp.float32)           # (C, TN)
            o_ref[b] = y.astype(o_ref.dtype)
    return kernel


def _make_lowrank_kernel(bt):
    """o[b] = W2 @ (W1 @ x[b]). Used when the sketch is genuinely low-rank."""
    def kernel(x_ref, w1_ref, w2_ref, o_ref):
        # x_ref/o_ref: (Bt, C, TN); w1_ref: (K, C); w2_ref: (C, K)
        w1 = w1_ref[...]
        w2 = w2_ref[...].astype(jnp.float32)      # match the f32 intermediate
        for b in range(bt):                       # static -> unrolled
            h = lax.dot_general(
                w1, x_ref[b],
                dimension_numbers=(((1,), (0,)), ((), ())),
                preferred_element_type=jnp.float32)           # (K, TN)
            y = lax.dot_general(
                w2, h,
                dimension_numbers=(((1,), (0,)), ((), ())),
                preferred_element_type=jnp.float32)           # (C, TN)
            o_ref[b] = y.astype(o_ref.dtype)
    return kernel


# --------------------------------------------------------------------------
# Tiling / VMEM budgeting helpers
# --------------------------------------------------------------------------
def _vmem_capacity_bytes():
    try:
        return int(pltpu.get_tpu_info().vmem_capacity_bytes)
    except Exception:
        return 64 << 20                            # conservative (v7x) fallback


def _largest_divisor_leq(n, cap):
    best = 1
    for d in range(1, n + 1):
        if n % d == 0 and d <= cap:
            best = d
    return best


def _choose_tiling(B, C, HW, itemsize, weight_bytes, vmem_cap):
    """Pick (bt, tile_n, n_tiles): a (bt, C, tile_n) block that is a large,
    lane-dense DMA and, double-buffered (in + out) plus resident weights,
    fits comfortably inside the per-generation VMEM budget."""
    budget = max(int(vmem_cap * 0.6) - 2 * weight_bytes, 1 << 20)

    # ---- lane tile (last dim): multiple of 128, or full extent when HW < 128.
    if HW < 128:
        tile_n = HW
    else:
        hw_cap = HW if HW % 128 == 0 else (HW // 128) * 128
        # Generation-aware lane cap: big tiles on 128 MiB parts, conservative
        # on v7x's 64 MiB VMEM. Also bounded by what the budget allows at Bt=1.
        lane_cap = 2048 if vmem_cap >= (96 << 20) else 512
        by_budget = budget // (4 * C * itemsize)   # 2 bufs x (in + out)
        tile_n = min(hw_cap, lane_cap, max(128, (by_budget // 128) * 128))

    # ---- batch sub-block: fold batches until the block reaches a healthy DMA
    # size (~512 KiB -> measured ~85% of HBM roofline regime), capped by the
    # VMEM budget and by unroll length (8).
    block_one = C * tile_n * itemsize
    by_budget = max(1, budget // (4 * block_one))
    desired = max(1, -(-(512 * 1024) // block_one))
    bt_cap = max(1, min(8, by_budget, desired))
    bt = _largest_divisor_leq(B, bt_cap)

    # ---- megacore (v7x): keep >=2 parallel grid steps when splitting still
    # leaves >=256 KiB blocks (otherwise per-step overhead dominates).
    n_tiles = pl.cdiv(HW, tile_n)
    if (B // bt) * n_tiles == 1 and tile_n >= 256:
        if bt * C * (tile_n // 2) * itemsize >= (256 << 10):
            tile_n = ((tile_n // 2) // 128) * 128
            n_tiles = pl.cdiv(HW, tile_n)

    return bt, tile_n, n_tiles


# --------------------------------------------------------------------------
# Public wrapper
# --------------------------------------------------------------------------
def sketch_layer(x, w1, w2):
    """x: (B, C, H, W); w1: (K, C); w2: (C, K). Returns (B, C, H, W)."""
    B, C, H, W = x.shape
    K, Cin = w1.shape
    assert Cin == C and w2.shape == (C, K)
    HW = H * W

    x3 = x.reshape(B, C, HW)                      # pure reshape, no HBM pass
    itemsize = jnp.dtype(x.dtype).itemsize
    vmem_cap = _vmem_capacity_bytes()
    io_bytes = 2 * B * C * HW * itemsize          # input + output HBM traffic

    # Fold W = W2 @ W1 only when it reduces MXU work (2K > C) AND the folded
    # (C, C) weight fits the VMEM budget next to a minimal pipelined block
    # (guards v7x's 64 MiB VMEM at large C).
    fused_w_bytes = C * C * itemsize
    lowrank_w_bytes = 2 * C * K * itemsize
    min_block = C * min(HW, 128) * itemsize
    fused_fits = (2 * fused_w_bytes + 4 * min_block) <= int(vmem_cap * 0.55)
    fuse_weights = (2 * K > C) and fused_fits
    # TODO(synk): for very large C (and K), neither the folded (C,C) weight nor
    # the (K,C)/(C,K) pair fits VMEM as a resident block; that case needs a
    # contraction-dim (K/C) tiled grid axis with an accumulator.

    if fuse_weights:
        w = jnp.dot(w2.astype(jnp.float32),
                    w1.astype(jnp.float32)).astype(x.dtype)
        weight_args = (w,)
        weight_specs = [pl.BlockSpec((C, C), lambda b, n: (0, 0))]
        weight_bytes = fused_w_bytes
        flops = 2 * B * HW * C * C
    else:
        weight_args = (w1.astype(x.dtype), w2.astype(x.dtype))
        weight_specs = [
            pl.BlockSpec((K, C), lambda b, n: (0, 0)),
            pl.BlockSpec((C, K), lambda b, n: (0, 0)),
        ]
        weight_bytes = lowrank_w_bytes
        flops = 4 * B * HW * C * K

    bt, tile_n, n_tiles = _choose_tiling(B, C, HW, itemsize, weight_bytes, vmem_cap)
    grid = (B // bt, n_tiles)                     # both axes independent
    total_steps = grid[0] * grid[1]
    block_bytes = bt * C * tile_n * itemsize

    # Deeper input pipelining only when blocks are small (DMA latency exposed)
    # and the grid is long enough for extra buffers to matter.
    deep_pipeline = (block_bytes < (512 << 10)) and (total_steps >= 3)
    if deep_pipeline:
        x_spec = pl.BlockSpec((bt, C, tile_n), lambda b, n: (b, 0, n),
                              pipeline_mode=pl.Buffered(3))
    else:
        x_spec = pl.BlockSpec((bt, C, tile_n), lambda b, n: (b, 0, n))
    out_spec = pl.BlockSpec((bt, C, tile_n), lambda b, n: (b, 0, n))

    # Explicit scoped-VMEM limit: weights (x2, conservative) + pipelined in/out
    # blocks, with ~50% headroom; never below 32 MiB, never above ~90% of the
    # physical capacity for this generation.
    in_bufs = 3 if deep_pipeline else 2
    needed = 2 * weight_bytes + (in_bufs + 2) * block_bytes
    vmem_limit = int(min(vmem_cap * 0.9, max(32 << 20, needed * 1.5)))

    kernel = _make_fused_kernel(bt) if fuse_weights else _make_lowrank_kernel(bt)

    out = pl.pallas_call(
        kernel,
        out_shape=jax.ShapeDtypeStruct((B, C, HW), x.dtype),
        grid_spec=pltpu.PrefetchScalarGridSpec(
            num_scalar_prefetch=0,
            grid=grid,
            in_specs=[x_spec, *weight_specs],
            out_specs=out_spec,
        ),
        compiler_params=pltpu.CompilerParams(
            dimension_semantics=("parallel", "parallel"),
            vmem_limit_bytes=vmem_limit,
        ),
        cost_estimate=pl.CostEstimate(
            flops=flops,
            transcendentals=0,
            bytes_accessed=io_bytes + weight_bytes,
        ),
    )(x3, *weight_args)

    return out.reshape(B, C, H, W)                # pure reshape, no HBM pass


# --------------------------------------------------------------------------
# Self-test
# --------------------------------------------------------------------------
if __name__ == "__main__":
    def ref_fn(x, w1, w2):
        Bb, Cc, Hh, Ww = x.shape
        xt = jnp.transpose(x.reshape(Bb, Cc, Hh * Ww), (0, 2, 1))
        r = jnp.einsum("bnc,kc,ok->bno", xt, w1, w2)
        return jnp.transpose(r, (0, 2, 1)).reshape(Bb, Cc, Hh, Ww)

    # Config 1 — matches the module's small example: B=2, C=4, H=W=16, k=8.
    # Exercises the fused-weight (2K > C) kernel with the batch folded into a
    # single large block.
    B, C, H, W, K = 2, 4, 16, 16, 8
    key = jax.random.PRNGKey(0)
    kx, k1, k2 = jax.random.split(key, 3)
    x = jax.random.normal(kx, (B, C, H, W), dtype=jnp.float32)
    w1 = jax.random.normal(k1, (K, C), dtype=jnp.float32) * (1.0 / C ** 0.5)
    w2 = jax.random.normal(k2, (C, K), dtype=jnp.float32) * (1.0 / K ** 0.5)

    y = jax.block_until_ready(sketch_layer(x, w1, w2))
    assert y.shape == (B, C, H, W)
    assert jnp.allclose(y, ref_fn(x, w1, w2), atol=1e-4, rtol=1e-4)

    # Config 2 — exercises the low-rank (2K <= C) kernel, batch folding, a
    # multi-step parallel grid and a ragged (non-128-multiple) HW tail.
    B2, C2, H2, W2, K2 = 2, 8, 20, 20, 2
    kx2, k12, k22 = jax.random.split(jax.random.PRNGKey(0), 3)
    x2 = jax.random.normal(kx2, (B2, C2, H2, W2), dtype=jnp.float32)
    w1b = jax.random.normal(k12, (K2, C2), dtype=jnp.float32) * (1.0 / C2 ** 0.5)
    w2b = jax.random.normal(k22, (C2, K2), dtype=jnp.float32) * (1.0 / K2 ** 0.5)

    y2 = jax.block_until_ready(sketch_layer(x2, w1b, w2b))
    assert y2.shape == (B2, C2, H2, W2)
    assert jnp.allclose(y2, ref_fn(x2, w1b, w2b), atol=1e-4, rtol=1e-4)

    print("KERNEL_OK")
</pallas_src>

<mosaic_0001>
module attributes {stable_mosaic.version = 11 : i64} {
  func.func @kernel(%arg0: i32, %arg1: i32, %arg2: memref<2x4x256xf32, #tpu.memory_space<vmem>>, %arg3: memref<4x4xf32, #tpu.memory_space<vmem>>, %arg4: memref<2x4x256xf32, #tpu.memory_space<vmem>>) attributes {dimension_semantics = [#tpu.dimension_semantics<parallel>, #tpu.dimension_semantics<parallel>], iteration_bounds = array<i64: 1, 1>, scalar_prefetch = 0 : i64, scratch_operands = 0 : i64, tpu.core_type = #tpu.core_type<tc>, window_params = [{transform_indices = @transform_0, window_bounds = array<i64: 2, 4, 256>}, {pipeline_mode = #tpu.pipeline_mode<synchronous>, transform_indices = @transform_1, window_bounds = array<i64: 4, 4>}, {transform_indices = @transform_2, window_bounds = array<i64: 2, 4, 256>}]} {
    %c0 = arith.constant 0 : index
    %c0_0 = arith.constant 0 : index
    %0 = vector.load %arg3[%c0, %c0_0] : memref<4x4xf32, #tpu.memory_space<vmem>>, vector<4x4xf32>
    %c0_1 = arith.constant 0 : index
    %c0_2 = arith.constant 0 : index
    %c0_3 = arith.constant 0 : index
    %1 = vector.load %arg2[%c0_1, %c0_2, %c0_3] : memref<2x4x256xf32, #tpu.memory_space<vmem>>, vector<1x4x256xf32>
    %2 = vector.shape_cast %1 : vector<1x4x256xf32> to vector<4x256xf32>
    %cst = arith.constant dense<0.000000e+00> : vector<4x256xf32>
    %3 = tpu.matmul %0, %2, %cst {dimension_numbers = #tpu.dot_dimension_numbers<[1], [0], [0], [1], [0, 0, 1, 1], [], []>} : vector<4x4xf32>, vector<4x256xf32>, vector<4x256xf32> -> vector<4x256xf32>
    %c0_4 = arith.constant 0 : index
    %c0_5 = arith.constant 0 : index
    %c0_6 = arith.constant 0 : index
    %4 = vector.load %arg4[%c0_4, %c0_5, %c0_6] : memref<2x4x256xf32, #tpu.memory_space<vmem>>, vector<1x4x256xf32>
    %5 = vector.shape_cast %4 : vector<1x4x256xf32> to vector<4x256xf32>
    %6 = vector.shape_cast %3 : vector<4x256xf32> to vector<1x4x256xf32>
    tpu.vector_store %arg4[%c0_4, %c0_5, %c0_6], %6 {strides = array<i32>} : memref<2x4x256xf32, #tpu.memory_space<vmem>>, vector<1x4x256xf32>,
    %c1 = arith.constant 1 : index
    %c0_7 = arith.constant 0 : index
    %c0_8 = arith.constant 0 : index
    %7 = vector.load %arg2[%c1, %c0_7, %c0_8] : memref<2x4x256xf32, #tpu.memory_space<vmem>>, vector<1x4x256xf32>
    %8 = vector.shape_cast %7 : vector<1x4x256xf32> to vector<4x256xf32>
    %cst_9 = arith.constant dense<0.000000e+00> : vector<4x256xf32>
    %9 = tpu.matmul %0, %8, %cst_9 {dimension_numbers = #tpu.dot_dimension_numbers<[1], [0], [0], [1], [0, 0, 1, 1], [], []>} : vector<4x4xf32>, vector<4x256xf32>, vector<4x256xf32> -> vector<4x256xf32>
    %c1_10 = arith.constant 1 : index
    %c0_11 = arith.constant 0 : index
    %c0_12 = arith.constant 0 : index
    %10 = vector.load %arg4[%c1_10, %c0_11, %c0_12] : memref<2x4x256xf32, #tpu.memory_space<vmem>>, vector<1x4x256xf32>
    %11 = vector.shape_cast %10 : vector<1x4x256xf32> to vector<4x256xf32>
    %12 = vector.shape_cast %9 : vector<4x256xf32> to vector<1x4x256xf32>
    tpu.vector_store %arg4[%c1_10, %c0_11, %c0_12], %12 {strides = array<i32>} : memref<2x4x256xf32, #tpu.memory_space<vmem>>, vector<1x4x256xf32>,
    return
  }
  func.func @transform_0(%arg0: i32, %arg1: i32) -> (i32, i32, i32) {
    %c0_i32 = arith.constant 0 : i32
    %c0_i32_0 = arith.constant 0 : i32
    return %arg0, %c0_i32, %arg1 : i32, i32, i32
  }
  func.func @transform_1(%arg0: i32, %arg1: i32) -> (i32, i32) {
    %c0_i32 = arith.constant 0 : i32
    %c0_i32_0 = arith.constant 0 : i32
    %c0_i32_1 = arith.constant 0 : i32
    return %c0_i32, %c0_i32_0 : i32, i32
  }
  func.func @transform_2(%arg0: i32, %arg1: i32) -> (i32, i32, i32) {
    %c0_i32 = arith.constant 0 : i32
    %c0_i32_0 = arith.constant 0 : i32
    return %arg0, %c0_i32, %arg1 : i32, i32, i32
  }
}

</mosaic_0001>

<llo_original>
// kernel: tpu_custom_call.1
$region0: #{tpu_custom_call.1}
  #allocation0 [shape = 'u32[]', space=smem, size = 0x4, offset = 0x4, fixed_abs, tag = 'smem constant byte address 0x4 - core index']
  #allocation1 [shape = 'u32[144,128]{1,0:T(1,128)}', space=vmem, size = 0x12000, scoped, tag = 'internal scratch']
  %s0 = inlined_call_operand.hbm [shape: f32[2,4,256], index: 0, kind: input, shape index: {}]
  %s1 = inlined_call_operand.hbm [shape: f32[4,4], index: 1, kind: input, shape index: {}]
  %s2 = inlined_call_operand.hbm [shape: f32[2,4,256], index: 2, kind: output, shape index: {}]
  %s3 = sld [smem:[#allocation0]]
  $region26: #{tpu_custom_call.1} parent=0
    _
  %s5 = ssub.s32 1, %s3
  %s6 = scalar_select 0, %s5, %s3
  $region1: #{tpu_custom_call.1} parent=0
    #allocation2 [shape = 'u8[8192]{0}', space=vmem, size = 0x2000, scoped, tag = 'input window, operand 0, single buffered']
    #allocation3 [shape = 's32[1]{0}', space=sflag, size = 0x4, scoped, tag = 'scoped memory for tpu_custom_call.1']
    #allocation4 [shape = 's32[1]{0}', space=sflag, size = 0x4, scoped, tag = 'scoped memory for tpu_custom_call.1']
    #allocation5 [shape = 'u8[2048]{0}', space=vmem, size = 0x800, scoped, tag = 'input window, operand 1, single buffered']
    #allocation6 [shape = 's32[1]{0}', space=sflag, size = 0x4, scoped, tag = 'scoped memory for tpu_custom_call.1']
    #allocation7 [shape = 'u8[8192]{0}', space=vmem, size = 0x2000, scoped, tag = 'output window, operand 0, single buffered']
    %7 = vsyncpa [#allocation3], 0
    %8 = vsyncpa [#allocation6], 0
    %9 = vsyncpa [#allocation4], 0
    // Predicated region
    $region2: #{tpu_custom_call.1} parent=1 // pred_check
      _
    $region3: #{tpu_custom_call.1} parent=1 // pred_check_branch
      %11 = sbr.rel (0) target = $region5
    $region4: #{tpu_custom_call.1} parent=1 // pred_region
      %s13 = ssub.s32 256, 256
      %14 = vsyncadd [#allocation3], %s13
      %s15 = sshll.u32 [#allocation2], 4
      %s16 = int_to_ptr.vmem [resolvable:$true] %s15
      %21 = dma.hbm_to_vmem [thread:$0]  %s0, 256, %s16, [#allocation3], 128, 128, 8
    $region5: #{tpu_custom_call.1} parent=1 // pred_fallthru
      _
    // Predicated region
    $region6: #{tpu_custom_call.1} parent=1 // pred_check
      _
    $region7: #{tpu_custom_call.1} parent=1 // pred_check_branch
      %23 = sbr.rel (0) target = $region9
    $region8: #{tpu_custom_call.1} parent=1 // pred_region
      %s25 = ssub.s32 64, 64
      %26 = vsyncadd [#allocation6], %s25
      %s28 = sshll.u32 [#allocation5], 4
      %s29 = int_to_ptr.vmem [resolvable:$true] %s28
      %31 = dma.hbm_to_vmem [thread:$0]  %s1, 64, %s29, [#allocation6]
    $region9: #{tpu_custom_call.1} parent=1 // pred_fallthru
      _
    // Predicated region
    $region10: #{tpu_custom_call.1} parent=1 // pred_check
      _
    $region11: #{tpu_custom_call.1} parent=1 // pred_check_branch
      %33 = sbr.rel (0) target = $region13
    $region12: #{tpu_custom_call.1} parent=1 // pred_region
      %34 = dma.done [#allocation3], 256
    $region13: #{tpu_custom_call.1} parent=1 // pred_fallthru
      _
    // Predicated region
    $region14: #{tpu_custom_call.1} parent=1 // pred_check
      _
    $region15: #{tpu_custom_call.1} parent=1 // pred_check_branch
      %36 = sbr.rel (0) target = $region17
    $region16: #{tpu_custom_call.1} parent=1 // pred_region
      %37 = dma.done [#allocation6], 64
    $region17: #{tpu_custom_call.1} parent=1 // pred_fallthru
      _
    %v38 = vld [vmem:[#allocation5] sm:$0xf]
    %v39 = vld [vmem:[#allocation2] sm:$0xff]
    %v41 = vcombine.high %v39, %v39
    %vm42 = vcmask 31744
    %v44 = vsel %vm42, %v38, 0
    %vm46 = vcmask 1043456
    %v47 = vsel %vm46, %v39, 0
    %v49 = vsel %vm46, %v41, 0
    %51 = vmatprep.subr.mxu0 %v49
    %52 = vmatpush1.msra.mxu0 %v47
    %53 = vmatprep.subr.mxu0 0.0
    %54 = vmatpush1.msra.mxu0 0.0
    %55 = vmatprep.subr.mxu0 0.0
    %56 = vmatpush1.msra.mxu0 0.0
    %57 = vmatprep.subr.mxu0 0.0
    %58 = vmatpush1.msra.mxu0 0.0
    %59 = vmatprep.subr.mxu0 0.0
    %60 = vmatpush1.msra.mxu0 0.0
    %61 = vmatprep.subr.mxu0 0.0
    %62 = vmatpush1.msra.mxu0 0.0
    %63 = vmatprep.subr.mxu0 0.0
    %64 = vmatpush1.msra.mxu0 0.0
    %65 = vmatprep.subr.mxu0 0.0
    %66 = vmatpush1.msra.mxu0 0.0
    %67 = vmatprep.subr.mxu0 0.0
    %68 = vmatpush1.msra.mxu0 0.0
    %69 = vmatprep.subr.mxu0 0.0
    %70 = vmatpush1.msra.mxu0 0.0
    %71 = vmatprep.subr.mxu0 0.0
    %72 = vmatpush1.msra.mxu0 0.0
    %73 = vmatprep.subr.mxu0 0.0
    %74 = vmatpush1.msra.mxu0 0.0
    %75 = vmatprep.subr.mxu0 0.0
    %76 = vmatpush1.msra.mxu0 0.0
    %77 = vmatprep.subr.mxu0 0.0
    %78 = vmatpush1.msra.mxu0 0.0
    %79 = vmatprep.subr.mxu0 0.0
    %80 = vmatpush1.msra.mxu0 0.0
    %81 = vmatprep.subr.mxu0 0.0
    %82 = vmatpush1.msra.mxu0 0.0
    %83 = vmatprep.subr.mxu0 0.0
    %84 = vmatpush1.msra.mxu0 0.0
    %85 = vmatprep.subr.mxu0 0.0
    %86 = vmatpush1.msra.mxu0 0.0
    %87 = vmatprep.subr.mxu0 0.0
    %88 = vmatpush1.msra.mxu0 0.0
    %89 = vmatprep.subr.mxu0 0.0
    %90 = vmatpush1.msra.mxu0 0.0
    %91 = vmatprep.subr.mxu0 0.0
    %92 = vmatpush1.msra.mxu0 0.0
    %93 = vmatprep.subr.mxu0 0.0
    %94 = vmatpush1.msra.mxu0 0.0
    %95 = vmatprep.subr.mxu0 0.0
    %96 = vmatpush1.msra.mxu0 0.0
    %97 = vmatprep.subr.mxu0 0.0
    %98 = vmatpush1.msra.mxu0 0.0
    %99 = vmatprep.subr.mxu0 0.0
    %100 = vmatpush1.msra.mxu0 0.0
    %101 = vmatprep.subr.mxu0 0.0
    %102 = vmatpush1.msra.mxu0 0.0
    %103 = vmatprep.subr.mxu0 0.0
    %104 = vmatpush1.msra.mxu0 0.0
    %105 = vmatprep.subr.mxu0 0.0
    %106 = vmatpush1.msra.mxu0 0.0
    %107 = vmatprep.subr.mxu0 0.0
    %108 = vmatpush1.msra.mxu0 0.0
    %109 = vmatprep.subr.mxu0 0.0
    %110 = vmatpush1.msra.mxu0 0.0
    %111 = vmatprep.subr.mxu0 0.0
    %112 = vmatpush1.msra.mxu0 0.0
    %113 = vmatprep.subr.mxu0 0.0
    %114 = vmatpush1.msra.mxu0 0.0
    %115 = vmatprep.mubr.f32.mxu0 0.0
    %116 = vmatmul.mubr.f32.gmra.mrb[0].mxu0 %v44
    %v117 = vpop.f32.mrb[0].mxu0
    %v118 = vadd.f32 0.0, %v117
    %v119 = vpop.f32.mrb[0].mxu0
    %v120 = vadd.f32 0.0, %v119
    %121 = vdwg.mxu0
    %v124 = vcombine.low %v118, %v120
    %126 = vst [vmem:[#allocation7] sm:$0xff] %v124
    %s127 = scalar_lea.vmem [#allocation2], 8
    %v128 = vld [vmem:[%s127] sm:$0xff]
    %v130 = vcombine.high %v128, %v128
    %v131 = vsel %vm46, %v128, 0
    %v133 = vsel %vm46, %v130, 0
    %135 = vmatprep.subr.mxu0 %v133
    %136 = vmatpush1.msra.mxu0 %v131
    %137 = vmatprep.subr.mxu0 0.0
    %138 = vmatpush1.msra.mxu0 0.0
    %139 = vmatprep.subr.mxu0 0.0
    %140 = vmatpush1.msra.mxu0 0.0
    %141 = vmatprep.subr.mxu0 0.0
    %142 = vmatpush1.msra.mxu0 0.0
    %143 = vmatprep.subr.mxu0 0.0
    %144 = vmatpush1.msra.mxu0 0.0
    %145 = vmatprep.subr.mxu0 0.0
    %146 = vmatpush1.msra.mxu0 0.0
    %147 = vmatprep.subr.mxu0 0.0
    %148 = vmatpush1.msra.mxu0 0.0
    %149 = vmatprep.subr.mxu0 0.0
    %150 = vmatpush1.msra.mxu0 0.0
    %151 = vmatprep.subr.mxu0 0.0
    %152 = vmatpush1.msra.mxu0 0.0
    %153 = vmatprep.subr.mxu0 0.0
    %154 = vmatpush1.msra.mxu0 0.0
    %155 = vmatprep.subr.mxu0 0.0
    %156 = vmatpush1.msra.mxu0 0.0
    %157 = vmatprep.subr.mxu0 0.0
    %158 = vmatpush1.msra.mxu0 0.0
    %159 = vmatprep.subr.mxu0 0.0
    %160 = vmatpush1.msra.mxu0 0.0
    %161 = vmatprep.subr.mxu0 0.0
    %162 = vmatpush1.msra.mxu0 0.0
    %163 = vmatprep.subr.mxu0 0.0
    %164 = vmatpush1.msra.mxu0 0.0
    %165 = vmatprep.subr.mxu0 0.0
    %166 = vmatpush1.msra.mxu0 0.0
    %167 = vmatprep.subr.mxu0 0.0
    %168 = vmatpush1.msra.mxu0 0.0
    %169 = vmatprep.subr.mxu0 0.0
    %170 = vmatpush1.msra.mxu0 0.0
    %171 = vmatprep.subr.mxu0 0.0
    %172 = vmatpush1.msra.mxu0 0.0
    %173 = vmatprep.subr.mxu0 0.0
    %174 = vmatpush1.msra.mxu0 0.0
    %175 = vmatprep.subr.mxu0 0.0
    %176 = vmatpush1.msra.mxu0 0.0
    %177 = vmatprep.subr.mxu0 0.0
    %178 = vmatpush1.msra.mxu0 0.0
    %179 = vmatprep.subr.mxu0 0.0
    %180 = vmatpush1.msra.mxu0 0.0
    %181 = vmatprep.subr.mxu0 0.0
    %182 = vmatpush1.msra.mxu0 0.0
    %183 = vmatprep.subr.mxu0 0.0
    %184 = vmatpush1.msra.mxu0 0.0
    %185 = vmatprep.subr.mxu0 0.0
    %186 = vmatpush1.msra.mxu0 0.0
    %187 = vmatprep.subr.mxu0 0.0
    %188 = vmatpush1.msra.mxu0 0.0
    %189 = vmatprep.subr.mxu0 0.0
    %190 = vmatpush1.msra.mxu0 0.0
    %191 = vmatprep.subr.mxu0 0.0
    %192 = vmatpush1.msra.mxu0 0.0
    %193 = vmatprep.subr.mxu0 0.0
    %194 = vmatpush1.msra.mxu0 0.0
    %195 = vmatprep.subr.mxu0 0.0
    %196 = vmatpush1.msra.mxu0 0.0
    %197 = vmatprep.subr.mxu0 0.0
    %198 = vmatpush1.msra.mxu0 0.0
    %199 = vmatprep.mubr.f32.mxu0 0.0
    %200 = vmatmul.mubr.f32.gmra.mrb[0].mxu0 %v44
    %v201 = vpop.f32.mrb[0].mxu0
    %v202 = vadd.f32 0.0, %v201
    %v203 = vpop.f32.mrb[0].mxu0
    %v204 = vadd.f32 0.0, %v203
    %205 = vdwg.mxu0
    %v208 = vcombine.low %v202, %v204
    %s210 = scalar_lea.vmem [#allocation7], 8
    %211 = vst [vmem:[%s210] sm:$0xff] %v208
    // Predicated region
    $region18: #{tpu_custom_call.1} parent=1 // pred_check
      _
    $region19: #{tpu_custom_call.1} parent=1 // pred_check_branch
      %213 = sbr.rel (0) target = $region21
    $region20: #{tpu_custom_call.1} parent=1 // pred_region
      %s215 = ssub.s32 256, 256
      %216 = vsyncadd [#allocation4], %s215
      %s217 = sshll.u32 [#allocation7], 4
      %s218 = int_to_ptr.vmem [resolvable:$true] %s217
      %223 = dma.vmem_to_hbm [thread:$0]  %s218, 256, %s2, [#allocation4], 128, 128, 8
    $region21: #{tpu_custom_call.1} parent=1 // pred_fallthru
      _
    // Predicated region
    $region22: #{tpu_custom_call.1} parent=1 // pred_check
      _
    $region23: #{tpu_custom_call.1} parent=1 // pred_check_branch
      %225 = sbr.rel (0) target = $region25
    $region24: #{tpu_custom_call.1} parent=1 // pred_region
      %226 = dma.done [#allocation4], 256
    $region25: #{tpu_custom_call.1} parent=1 // pred_fallthru
      _
    %227 = vsyncpa [#allocation3], 1
    %228 = vsyncpa [#allocation6], 1
    %229 = vsyncpa [#allocation4], 1

</llo_original>
